<compile_context>
chip_gen: v5e
topology: v5e:2x2
jax: 0.10.0
libtpu: 0.0.40
codegen_flags: <defaults>
</compile_context>

<pallas_src>
import functools

import jax
import jax.numpy as jnp
from jax.experimental import pallas as pl
from jax.experimental.pallas import tpu as pltpu

LANES = 128
SUBLANES = 8
MIN_CHUNK = SUBLANES * LANES              # 1024 elements = one (8,128) vreg
TARGET_BLOCK_BYTES = 2 * 1024 * 1024      # per input stream, per grid block
PAD_LOGIT = -1.0e4                        # exp(-|x|)==0 -> padded loss == 0


def _round_up(n, m):
    return ((n + m - 1) // m) * m


def _focal_sum_kernel(x_ref, t_ref, acc_ref, *, alpha, gamma, block_rows,
                      valid_rows_last):
    """Accumulates per-core partial sums of the per-element focal loss."""
    i = pl.program_id(1)

    @pl.when(i == 0)
    def _():
        acc_ref[...] = jnp.zeros_like(acc_ref)

    x = x_ref[...].astype(jnp.float32)    # logits (native dtype DMA, f32 math)
    t = t_ref[...].astype(jnp.float32)    # targets in [0, 1]

    # One exp(-|x|) shared by sigmoid and the numerically stable BCE:
    #   ce = max(x, 0) - x*t + log1p(exp(-|x|))
    #   sigmoid(x) = 1/(1+e)  if x >= 0,   e/(1+e)  if x < 0,   e = exp(-|x|)
    e = jnp.exp(-jnp.abs(x))
    s = 1.0 + e
    r = pl.reciprocal(s, approx=True)     # EUP slot (frees VALU)
    r = r * (2.0 - s * r)                 # one Newton step -> f32-accurate
    p = jnp.where(x >= 0.0, r, e * r)
    ce = jnp.maximum(x, 0.0) - x * t + jnp.log1p(e)

    # Modulating factor (1 - p_t)^gamma; gamma is static, special-case it.
    p_t = p * t + (1.0 - p) * (1.0 - t)
    omp = 1.0 - p_t
    if gamma == 2.0:
        loss = ce * (omp * omp)
    elif gamma == 1.0:
        loss = ce * omp
    elif gamma == 0.0:
        loss = ce
    else:
        loss = ce * jnp.power(omp, jnp.float32(gamma))

    # Alpha balancing (alpha >= 0 branch of torchvision's sigmoid_focal_loss).
    if alpha >= 0:
        loss = (alpha * t + (1.0 - alpha) * (1.0 - t)) * loss

    # Partial-sum into the resident (8,128) output accumulator: pure VALU adds
    # of sublane groups; no cross-lane reduce inside the kernel.
    def add_rows(nrows):
        def _do():
            acc_ref[...] += loss[:nrows].reshape(
                nrows // SUBLANES, SUBLANES, LANES).sum(axis=0)
        return _do

    if valid_rows_last == block_rows:
        # Grid covers the per-core slab exactly: no tail handling anywhere.
        add_rows(block_rows)()
    else:
        # Only the last block per core is partial; drop its out-of-range rows
        # with a *static* prefix slice (no iota/where mask on full blocks).
        last = pl.num_programs(1) - 1
        pl.when(i != last)(add_rows(block_rows))
        pl.when(i == last)(add_rows(valid_rows_last))


def bf_with_logits_loss(logits, targets, alpha=0.25, gamma=2.0,
                        reduction="mean", max_block_rows=None):
    """JAX/Pallas equivalent of BFWithLogitsLoss.forward ('mean'/'sum')."""
    assert logits.shape == targets.shape
    n_valid = int(logits.size)
    assert n_valid > 0

    if not jnp.issubdtype(logits.dtype, jnp.floating):
        logits = logits.astype(jnp.float32)
    if not jnp.issubdtype(targets.dtype, jnp.floating):
        targets = targets.astype(jnp.float32)

    x = jnp.ravel(logits)
    t = jnp.ravel(targets)

    # --- plan padding / core split (pad only when unavoidable) -------------
    # The flat slab must be a multiple of 1024 (8x128 rows); the 2-core split
    # additionally needs rows % 16 == 0.  Never introduce a pad (a full HBM
    # copy) solely for the core split.
    if n_valid % MIN_CHUNK != 0:
        padded = _round_up(n_valid, 2 * MIN_CHUNK)    # pad unavoidable anyway
    else:
        padded = n_valid
    rows = padded // LANES                            # multiple of 8
    num_cores = 2 if (rows % (2 * SUBLANES) == 0 and rows >= 2 * SUBLANES) else 1

    if padded != n_valid:
        # Sentinel padding: logits=-1e4, targets=0  =>  exp(-|x|)==0, ce==0,
        # (1-p_t)==0, so padded elements contribute exactly 0 to the sum.
        x = jnp.pad(x, (0, padded - n_valid), constant_values=PAD_LOGIT)
        t = jnp.pad(t, (0, padded - n_valid), constant_values=0)
        # TODO(synk): for very large ragged inputs this pad is a full HBM
        # copy; a manual-DMA tail path would avoid it.

    per_core_rows = rows // num_cores                 # multiple of 8

    itemsize = max(jnp.dtype(x.dtype).itemsize, jnp.dtype(t.dtype).itemsize)
    if max_block_rows is None:
        max_block_rows = max(
            SUBLANES,
            (TARGET_BLOCK_BYTES // (LANES * itemsize)) // SUBLANES * SUBLANES)
    block_rows = min(max_block_rows, per_core_rows)   # multiple of 8
    blocks_per_core = pl.cdiv(per_core_rows, block_rows)
    # Rows of the last (possibly partial) block per core that are in range.
    valid_rows_last = per_core_rows - (blocks_per_core - 1) * block_rows

    x3 = x.reshape(num_cores, per_core_rows, LANES)
    t3 = t.reshape(num_cores, per_core_rows, LANES)

    in_spec = pl.BlockSpec((None, block_rows, LANES), lambda c, i: (c, i, 0))
    out_spec = pl.BlockSpec((None, SUBLANES, LANES), lambda c, i: (c, 0, 0))

    kernel = functools.partial(
        _focal_sum_kernel, alpha=float(alpha), gamma=float(gamma),
        block_rows=block_rows, valid_rows_last=valid_rows_last)

    # VMEM: 2 inputs x 2 pipeline buffers x <=2 MiB + per-core (8,128) f32
    # output stays well under default scoped-VMEM on v5e/v6e/v7x.
    partials = pl.pallas_call(
        kernel,
        out_shape=jax.ShapeDtypeStruct((num_cores, SUBLANES, LANES),
                                       jnp.float32),
        grid_spec=pltpu.PrefetchScalarGridSpec(
            num_scalar_prefetch=0,
            grid=(num_cores, blocks_per_core),
            in_specs=[in_spec, in_spec],
            out_specs=out_spec,
        ),
        compiler_params=pltpu.CompilerParams(
            dimension_semantics=("parallel", "arbitrary")),
    )(x3, t3)

    loss_sum = jnp.sum(partials)
    if reduction == "mean":
        return loss_sum / jnp.float32(n_valid)
    elif reduction == "sum":
        return loss_sum
    else:
        # TODO(synk): reduction='none' would need the per-element loss map as
        # output; not exercised by the module's default ('mean').
        raise NotImplementedError(f"reduction={reduction!r}")


def _reference_focal_loss(logits, targets, alpha=0.25, gamma=2.0,
                          reduction="mean"):
    x = logits.astype(jnp.float32)
    t = targets.astype(jnp.float32)
    p = jax.nn.sigmoid(x)
    ce = jnp.maximum(x, 0.0) - x * t + jnp.log1p(jnp.exp(-jnp.abs(x)))
    p_t = p * t + (1.0 - p) * (1.0 - t)
    loss = ce * (1.0 - p_t) ** gamma
    if alpha >= 0:
        alpha_t = alpha * t + (1.0 - alpha) * (1.0 - t)
        loss = alpha_t * loss
    return jnp.mean(loss) if reduction == "mean" else jnp.sum(loss)


if __name__ == "__main__":
    key = jax.random.PRNGKey(0)
    k1, k2, k3, k4, k5, k6 = jax.random.split(key, 6)

    def check(out, ref, rtol=1e-4, atol=1e-6):
        out = jax.block_until_ready(out)
        assert jnp.allclose(out, ref, rtol=rtol, atol=atol), (out, ref)

    # 1) NCHW-like logit map; 2048 elements -> no padding, 2-core grid path.
    shape = (2, 4, 16, 16)
    logits = jax.random.normal(k1, shape, dtype=jnp.float32) * 2.0
    targets = (jax.random.uniform(k2, shape) > 0.5).astype(jnp.float32)
    check(bf_with_logits_loss(logits, targets, alpha=0.25, gamma=2.0),
          _reference_focal_loss(logits, targets, alpha=0.25, gamma=2.0))

    # 2) Ragged shape -> sentinel-padding path.
    shape2 = (3, 5, 7)
    logits2 = jax.random.normal(k3, shape2, dtype=jnp.float32) * 3.0
    targets2 = (jax.random.uniform(k4, shape2) > 0.5).astype(jnp.float32)
    check(bf_with_logits_loss(logits2, targets2),
          _reference_focal_loss(logits2, targets2))

    # 3) Multiple blocks per core + partial last block (forced small blocks).
    shape3 = (3, 2, 32, 32)
    logits3 = jax.random.normal(k5, shape3, dtype=jnp.float32) * 2.0
    targets3 = (jax.random.uniform(k6, shape3) > 0.5).astype(jnp.float32)
    check(bf_with_logits_loss(logits3, targets3, max_block_rows=16),
          _reference_focal_loss(logits3, targets3))

    # 4) bf16 inputs (native-dtype DMA, in-kernel f32 cast) + 'sum' reduction.
    check(bf_with_logits_loss(logits.astype(jnp.bfloat16),
                              targets.astype(jnp.bfloat16), reduction="sum"),
          _reference_focal_loss(logits.astype(jnp.bfloat16),
                                targets.astype(jnp.bfloat16), reduction="sum"),
          rtol=1e-4, atol=1e-4)

    print("KERNEL_OK")
</pallas_src>

<mosaic_0001>
module attributes {stable_mosaic.version = 11 : i64} {
  func.func @_focal_sum_kernel(%arg0: i32, %arg1: i32, %arg2: memref<1x8x128xf32, #tpu.memory_space<vmem>>, %arg3: memref<1x8x128xf32, #tpu.memory_space<vmem>>, %arg4: memref<1x8x128xf32, #tpu.memory_space<vmem>>) attributes {dimension_semantics = [#tpu.dimension_semantics<parallel>, #tpu.dimension_semantics<arbitrary>], iteration_bounds = array<i64: 2, 1>, scalar_prefetch = 0 : i64, scratch_operands = 0 : i64, tpu.core_type = #tpu.core_type<tc>, window_params = [{transform_indices = @transform_0, window_bounds = array<i64: 1, 8, 128>}, {transform_indices = @transform_1, window_bounds = array<i64: 1, 8, 128>}, {transform_indices = @transform_2, window_bounds = array<i64: 1, 8, 128>}]} {
    %c0_i32 = arith.constant 0 : i32
    %0 = arith.cmpi eq, %arg1, %c0_i32 : i32
    %1 = arith.extui %0 : i1 to i32
    %c0_i32_0 = arith.constant 0 : i32
    %2 = arith.cmpi ne, %1, %c0_i32_0 : i32
    scf.if %2 {
      %cst_23 = arith.constant 0.000000e+00 : f32
      %55 = vector.broadcast %cst_23 : f32 to vector<8x128xf32>
      %c0_24 = arith.constant 0 : index
      %c0_25 = arith.constant 0 : index
      %c0_26 = arith.constant 0 : index
      %56 = vector.load %arg4[%c0_24, %c0_25, %c0_26] : memref<1x8x128xf32, #tpu.memory_space<vmem>>, vector<1x8x128xf32>
      %57 = vector.shape_cast %56 : vector<1x8x128xf32> to vector<8x128xf32>
      %58 = vector.shape_cast %55 : vector<8x128xf32> to vector<1x8x128xf32>
      tpu.vector_store %arg4[%c0_24, %c0_25, %c0_26], %58 {strides = array<i32>} : memref<1x8x128xf32, #tpu.memory_space<vmem>>, vector<1x8x128xf32>,
    } else {
    }
    %c0 = arith.constant 0 : index
    %c0_1 = arith.constant 0 : index
    %c0_2 = arith.constant 0 : index
    %3 = vector.load %arg2[%c0, %c0_1, %c0_2] : memref<1x8x128xf32, #tpu.memory_space<vmem>>, vector<1x8x128xf32>
    %4 = vector.shape_cast %3 : vector<1x8x128xf32> to vector<8x128xf32>
    %c0_3 = arith.constant 0 : index
    %c0_4 = arith.constant 0 : index
    %c0_5 = arith.constant 0 : index
    %5 = vector.load %arg3[%c0_3, %c0_4, %c0_5] : memref<1x8x128xf32, #tpu.memory_space<vmem>>, vector<1x8x128xf32>
    %6 = vector.shape_cast %5 : vector<1x8x128xf32> to vector<8x128xf32>
    %7 = math.absf %4 : vector<8x128xf32>
    %cst = arith.constant 0.000000e+00 : f32
    %8 = vector.broadcast %cst : f32 to vector<8x128xf32>
    %9 = arith.subf %8, %7 : vector<8x128xf32>
    %10 = math.exp %9 : vector<8x128xf32>
    %cst_6 = arith.constant 1.000000e+00 : f32
    %11 = vector.broadcast %cst_6 : f32 to vector<8x128xf32>
    %12 = arith.addf %11, %10 : vector<8x128xf32>
    %13 = tpu.reciprocal %12 {approx = true} : vector<8x128xf32> -> vector<8x128xf32>
    %14 = arith.mulf %12, %13 : vector<8x128xf32>
    %cst_7 = arith.constant 2.000000e+00 : f32
    %15 = vector.broadcast %cst_7 : f32 to vector<8x128xf32>
    %16 = arith.subf %15, %14 : vector<8x128xf32>
    %17 = arith.mulf %13, %16 : vector<8x128xf32>
    %cst_8 = arith.constant 0.000000e+00 : f32
    %18 = vector.broadcast %cst_8 : f32 to vector<8x128xf32>
    %19 = arith.cmpf oge, %4, %18 : vector<8x128xf32>
    %20 = arith.mulf %10, %17 : vector<8x128xf32>
    %21 = arith.select %19, %17, %20 : vector<8x128xi1>, vector<8x128xf32>
    %cst_9 = arith.constant 0.000000e+00 : f32
    %22 = vector.broadcast %cst_9 : f32 to vector<8x128xf32>
    %23 = arith.maximumf %4, %22 : vector<8x128xf32>
    %24 = arith.mulf %4, %6 : vector<8x128xf32>
    %25 = arith.subf %23, %24 : vector<8x128xf32>
    %26 = math.log1p %10 : vector<8x128xf32>
    %27 = arith.addf %25, %26 : vector<8x128xf32>
    %28 = arith.mulf %21, %6 : vector<8x128xf32>
    %cst_10 = arith.constant 1.000000e+00 : f32
    %29 = vector.broadcast %cst_10 : f32 to vector<8x128xf32>
    %30 = arith.subf %29, %21 : vector<8x128xf32>
    %cst_11 = arith.constant 1.000000e+00 : f32
    %31 = vector.broadcast %cst_11 : f32 to vector<8x128xf32>
    %32 = arith.subf %31, %6 : vector<8x128xf32>
    %33 = arith.mulf %30, %32 : vector<8x128xf32>
    %34 = arith.addf %28, %33 : vector<8x128xf32>
    %cst_12 = arith.constant 1.000000e+00 : f32
    %35 = vector.broadcast %cst_12 : f32 to vector<8x128xf32>
    %36 = arith.subf %35, %34 : vector<8x128xf32>
    %37 = arith.mulf %36, %36 : vector<8x128xf32>
    %38 = arith.mulf %27, %37 : vector<8x128xf32>
    %cst_13 = arith.constant 2.500000e-01 : f32
    %39 = vector.broadcast %cst_13 : f32 to vector<8x128xf32>
    %40 = arith.mulf %39, %6 : vector<8x128xf32>
    %cst_14 = arith.constant 1.000000e+00 : f32
    %41 = vector.broadcast %cst_14 : f32 to vector<8x128xf32>
    %42 = arith.subf %41, %6 : vector<8x128xf32>
    %cst_15 = arith.constant 7.500000e-01 : f32
    %43 = vector.broadcast %cst_15 : f32 to vector<8x128xf32>
    %44 = arith.mulf %43, %42 : vector<8x128xf32>
    %45 = arith.addf %40, %44 : vector<8x128xf32>
    %46 = arith.mulf %45, %38 : vector<8x128xf32>
    %c0_16 = arith.constant 0 : index
    %c0_17 = arith.constant 0 : index
    %c0_18 = arith.constant 0 : index
    %47 = vector.load %arg4[%c0_16, %c0_17, %c0_18] : memref<1x8x128xf32, #tpu.memory_space<vmem>>, vector<1x8x128xf32>
    %48 = vector.shape_cast %47 : vector<1x8x128xf32> to vector<8x128xf32>
    %49 = vector.shape_cast %46 : vector<8x128xf32> to vector<1x8x128xf32>
    %cst_19 = arith.constant dense<0.000000e+00> : vector<8x128xf32>
    %50 = vector.multi_reduction <add>, %49, %cst_19 [0] : vector<1x8x128xf32> to vector<8x128xf32>
    %51 = arith.addf %48, %50 : vector<8x128xf32>
    %c0_20 = arith.constant 0 : index
    %c0_21 = arith.constant 0 : index
    %c0_22 = arith.constant 0 : index
    %52 = vector.load %arg4[%c0_20, %c0_21, %c0_22] : memref<1x8x128xf32, #tpu.memory_space<vmem>>, vector<1x8x128xf32>
    %53 = vector.shape_cast %52 : vector<1x8x128xf32> to vector<8x128xf32>
    %54 = vector.shape_cast %51 : vector<8x128xf32> to vector<1x8x128xf32>
    tpu.vector_store %arg4[%c0_20, %c0_21, %c0_22], %54 {strides = array<i32>} : memref<1x8x128xf32, #tpu.memory_space<vmem>>, vector<1x8x128xf32>,
    return
  }
  func.func @transform_0(%arg0: i32, %arg1: i32) -> (i32, i32, i32) {
    %c0_i32 = arith.constant 0 : i32
    %c0_i32_0 = arith.constant 0 : i32
    return %arg0, %arg1, %c0_i32 : i32, i32, i32
  }
  func.func @transform_1(%arg0: i32, %arg1: i32) -> (i32, i32, i32) {
    %c0_i32 = arith.constant 0 : i32
    %c0_i32_0 = arith.constant 0 : i32
    return %arg0, %arg1, %c0_i32 : i32, i32, i32
  }
  func.func @transform_2(%arg0: i32, %arg1: i32) -> (i32, i32, i32) {
    %c0_i32 = arith.constant 0 : i32
    %c0_i32_0 = arith.constant 0 : i32
    %c0_i32_1 = arith.constant 0 : i32
    return %arg0, %c0_i32, %c0_i32_0 : i32, i32, i32
  }
}

</mosaic_0001>

<llo_original>
// kernel: tpu_custom_call.1
$region0: #{tpu_custom_call.1}
  #allocation0 [shape = 'u32[]', space=smem, size = 0x4, offset = 0x4, fixed_abs, tag = 'smem constant byte address 0x4 - core index']
  #allocation1 [shape = 'u32[72,128]{1,0:T(1,128)}', space=vmem, size = 0x9000, scoped, tag = 'internal scratch']
  %s0 = inlined_call_operand.hbm [shape: f32[2,8,128], index: 0, kind: input, shape index: {}]
  %s1 = inlined_call_operand.hbm [shape: f32[2,8,128], index: 1, kind: input, shape index: {}]
  %s2 = inlined_call_operand.hbm [shape: f32[2,8,128], index: 2, kind: output, shape index: {}]
  %s3 = sld [smem:[#allocation0]]
  $region53: #{tpu_custom_call.1} parent=0
    _
  %s5 = ssub.s32 1, %s3
  %s6 = scalar_select 0, %s5, %s3
  $region1: #{tpu_custom_call.1} parent=0
    #allocation2 [shape = 'u8[8192]{0}', space=vmem, size = 0x2000, scoped, tag = 'input window, operand 0']
    #allocation3 [shape = 's32[2]{0}', space=sflag, size = 0x8, scoped, tag = 'scoped memory for tpu_custom_call.1']
    #allocation4 [shape = 's32[2]{0}', space=sflag, size = 0x8, scoped, tag = 'scoped memory for tpu_custom_call.1']
    #allocation5 [shape = 'u8[8192]{0}', space=vmem, size = 0x2000, scoped, tag = 'input window, operand 1']
    #allocation6 [shape = 's32[2]{0}', space=sflag, size = 0x8, scoped, tag = 'scoped memory for tpu_custom_call.1']
    #allocation7 [shape = 'u8[8192]{0}', space=vmem, size = 0x2000, scoped, tag = 'output window, operand 0']
    %7 = vsyncpa [#allocation3], 0
    %s8 = scalar_lea.sflag [#allocation3], 1
    %9 = vsyncpa %s8, 0
    %10 = vsyncpa [#allocation6], 0
    %s11 = scalar_lea.sflag [#allocation6], 1
    %12 = vsyncpa %s11, 0
    %13 = vsyncpa [#allocation4], 0
    %s14 = scalar_lea.sflag [#allocation4], 1
    %15 = vsyncpa %s14, 0
    loop: start=0, step=1, limit=4
    $region2: #{tpu_custom_call.1} parent=1 // loop_pre_header
      _
    $region3: #{tpu_custom_call.1} parent=1 // loop_header
      %s17 = sphi 0, %s21
      %p18 = scmp.ge.s32.totalorder %s17, 4
      %s24 = sphi 0, %s36
      %s25 = sphi 0, %s32
      %s26 = sphi 0, %s24
      %s27 = sphi 0, %s25
      %s28 = sphi 0, %s26
      %s29 = sphi 0, %s27
      %s41 = sphi 0, %s43
      %s44 = sphi 0, %s41
      %s45 = sphi 0, %s44
      %s61 = sphi 0, %s45
      %s69 = sphi 0, %s71
      %s72 = sphi 0, %s69
      %s73 = sphi 0, %s72
      %s89 = sphi 0, %s73
      %s95 = sphi 0, %s97
      %s98 = sphi 0, %s95
      %s99 = sphi 0, %s98
      %s115 = sphi 0, %s99
    $region4: #{tpu_custom_call.1} parent=1 // loop_header_branch
      %20 = sbr.rel (%p18) target = $region8
    $region5: #{tpu_custom_call.1} parent=1 // loop_body
      %s22 = ssub.s32 %s17, 1
      %s23 = ssub.s32 %s17, 2
      %s30 = sadd.s32 1, %s25
      %p31 = scmp.ge.s32.totalorder %s30, 1
      %s32 = scalar_select %p31, 0, %s30
      %s33 = sadd.s32 1, %s24
      %s34 = scalar_select %p31, %s33, %s24
      %p35 = scmp.ge.s32.totalorder %s34, 2
      %s36 = scalar_select %p35, 0, %s34
      %s37 = ssub.s32 %s24, %s36
      %s38 = ssub.s32 %s25, %s32
      %s39 = sor.u32 %s37, %s38
      %p40 = scmp.eq.s32.totalorder %s39, 0
      %s42 = sadd.s32 %s41, 1
      %s43 = scalar_select %p40, %s41, %s42
      %p46 = pneg %p40
      %p47 = scmp.eq.s32.totalorder %s17, 1
      %p48 = por %p46, %p47
      %p49 = scmp.ne.s32.totalorder %s41, %s44
      %p50 = scmp.eq.s32.totalorder %s17, 0
      %p51 = por %p49, %p50
      %p52 = scmp.ne.s32.totalorder %s41, %s44
      %p53 = scmp.eq.s32.totalorder %s22, 1
      %p54 = por %p52, %p53
      %p55 = scmp.ne.s32.totalorder %s44, %s45
      %p56 = scmp.eq.s32.totalorder %s22, 0
      %p57 = por %p55, %p56
      %p58 = scmp.ne.s32.totalorder %s44, %s45
      %p59 = scmp.eq.s32.totalorder %s23, 1
      %p60 = por %p58, %p59
      %p62 = scmp.ne.s32.totalorder %s45, %s61
      %p63 = scmp.eq.s32.totalorder %s23, 0
      %p64 = por %p62, %p63
      %s65 = ssub.s32 %s24, %s36
      %s66 = ssub.s32 %s25, %s32
      %s67 = sor.u32 %s65, %s66
      %p68 = scmp.eq.s32.totalorder %s67, 0
      %s70 = sadd.s32 %s69, 1
      %s71 = scalar_select %p68, %s69, %s70
      %p74 = pneg %p68
      %p75 = scmp.eq.s32.totalorder %s17, 1
      %p76 = por %p74, %p75
      %p77 = scmp.ne.s32.totalorder %s69, %s72
      %p78 = scmp.eq.s32.totalorder %s17, 0
      %p79 = por %p77, %p78
      %p80 = scmp.ne.s32.totalorder %s69, %s72
      %p81 = scmp.eq.s32.totalorder %s22, 1
      %p82 = por %p80, %p81
      %p83 = scmp.ne.s32.totalorder %s72, %s73
      %p84 = scmp.eq.s32.totalorder %s22, 0
      %p85 = por %p83, %p84
      %p86 = scmp.ne.s32.totalorder %s72, %s73
      %p87 = scmp.eq.s32.totalorder %s23, 1
      %p88 = por %p86, %p87
      %p90 = scmp.ne.s32.totalorder %s73, %s89
      %p91 = scmp.eq.s32.totalorder %s23, 0
      %p92 = por %p90, %p91
      %s93 = ssub.s32 %s24, %s36
      %p94 = scmp.eq.s32.totalorder %s93, 0
      %s96 = sadd.s32 %s95, 1
      %s97 = scalar_select %p94, %s95, %s96
      %p100 = pneg %p94
      %p101 = scmp.eq.s32.totalorder %s17, 1
      %p102 = por %p100, %p101
      %p103 = scmp.ne.s32.totalorder %s95, %s98
      %p104 = scmp.eq.s32.totalorder %s17, 0
      %p105 = por %p103, %p104
      %p106 = scmp.ne.s32.totalorder %s95, %s98
      %p107 = scmp.eq.s32.totalorder %s22, 1
      %p108 = por %p106, %p107
      %p109 = scmp.ne.s32.totalorder %s98, %s99
      %p110 = scmp.eq.s32.totalorder %s22, 0
      %p111 = por %p109, %p110
      %p112 = scmp.ne.s32.totalorder %s98, %s99
      %p113 = scmp.eq.s32.totalorder %s23, 1
      %p114 = por %p112, %p113
      %p116 = scmp.ne.s32.totalorder %s99, %s115
      %p117 = scmp.eq.s32.totalorder %s23, 0
      %p118 = por %p116, %p117
      %p119 = scmp.le.s32.totalorder 1, %s17
      %p120 = scmp.lt.s32.totalorder %s17, 3
      %p121 = pnand %p119, %p120
      %p122 = pneg %p121
      // Predicated region
      $region9: #{tpu_custom_call.1} parent=5 // pred_check
        _
      $region10: #{tpu_custom_call.1} parent=5 // pred_check_branch
        %124 = sbr.rel (%p121) target = $region12
      $region11: #{tpu_custom_call.1} parent=5 // pred_region
        %s125 = ssub.s32 %s17, 1
      $region12: #{tpu_custom_call.1} parent=5 // pred_fallthru
        _
      %p126 = scmp.lt.s32.totalorder %s17, 2
      // Predicated region
      $region13: #{tpu_custom_call.1} parent=5 // pred_check
        %p127 = pneg %p126
      $region14: #{tpu_custom_call.1} parent=5 // pred_check_branch
        %129 = sbr.rel (%p127) target = $region16
      $region15: #{tpu_custom_call.1} parent=5 // pred_region
        // Predicated region
        $region17: #{tpu_custom_call.1} parent=15 // pred_check
          %p130 = pneg %p51
        $region18: #{tpu_custom_call.1} parent=15 // pred_check_branch
          %132 = sbr.rel (%p130) target = $region20
        $region19: #{tpu_custom_call.1} parent=15 // pred_region
          %s133 = sand.u32 %s41, 1
          %s134 = scalar_lea.sflag [#allocation3], %s133
          %s135 = sand.u32 %s41, 1
          %s136 = smul.addr %s135, 8
          %s137 = scalar_lea.vmem [#allocation2], %s136
          %139 = vsyncadd %s134, 0
          %s140 = sadd.s32 %s25, %s24
          %s141 = smul.addr %s140, 8
          %s142 = scalar_lea.hbm %s0, %s141
          %s144 = sshll.u32 %s142, 4
          %s145 = int_to_ptr.hbm [resolvable:$true] %s144
          %s146 = sshll.u32 %s137, 4
          %s147 = int_to_ptr.vmem [resolvable:$true] %s146
          %149 = dma.hbm_to_vmem [thread:$0]  %s145, 128, %s147, %s134
        $region20: #{tpu_custom_call.1} parent=15 // pred_fallthru
          _
        // Predicated region
        $region21: #{tpu_custom_call.1} parent=15 // pred_check
          %p150 = pneg %p79
        $region22: #{tpu_custom_call.1} parent=15 // pred_check_branch
          %152 = sbr.rel (%p150) target = $region24
        $region23: #{tpu_custom_call.1} parent=15 // pred_region
          %s153 = sand.u32 %s69, 1
          %s154 = scalar_lea.sflag [#allocation6], %s153
          %s155 = sand.u32 %s69, 1
          %s156 = smul.addr %s155, 8
          %s157 = scalar_lea.vmem [#allocation5], %s156
          %159 = vsyncadd %s154, 0
          %s160 = sadd.s32 %s25, %s24
          %s161 = smul.addr %s160, 8
          %s162 = scalar_lea.hbm %s1, %s161
          %s164 = sshll.u32 %s162, 4
          %s165 = int_to_ptr.hbm [resolvable:$true] %s164
          %s166 = sshll.u32 %s157, 4
          %s167 = int_to_ptr.vmem [resolvable:$true] %s166
          %169 = dma.hbm_to_vmem [thread:$0]  %s165, 128, %s167, %s154
        $region24: #{tpu_custom_call.1} parent=15 // pred_fallthru
          _
      $region16: #{tpu_custom_call.1} parent=5 // pred_fallthru
        _
      %p170 = scmp.le.s32.totalorder 1, %s17
      %p171 = scmp.lt.s32.totalorder %s17, 3
      %p172 = pnand %p170, %p171
      %p173 = pneg %p172
      // Predicated region
      $region25: #{tpu_custom_call.1} parent=5 // pred_check
        _
      $region26: #{tpu_custom_call.1} parent=5 // pred_check_branch
        %175 = sbr.rel (%p172) target = $region28
      $region27: #{tpu_custom_call.1} parent=5 // pred_region
        %s176 = ssub.s32 %s17, 1
        %s177 = sand.u32 %s44, 1
        %s178 = scalar_lea.sflag [#allocation3], %s177
        %s179 = sand.u32 %s44, 1
        %s180 = smul.addr %s179, 8
        %s181 = scalar_lea.vmem [#allocation2], %s180
        // Predicated region
        $region29: #{tpu_custom_call.1} parent=27 // pred_check
          %p182 = pneg %p57
        $region30: #{tpu_custom_call.1} parent=27 // pred_check_branch
          %184 = sbr.rel (%p182) target = $region32
        $region31: #{tpu_custom_call.1} parent=27 // pred_region
          %186 = dma.done %s178, 128
        $region32: #{tpu_custom_call.1} parent=27 // pred_fallthru
          _
        %s187 = sand.u32 %s72, 1
        %s188 = scalar_lea.sflag [#allocation6], %s187
        %s189 = sand.u32 %s72, 1
        %s190 = smul.addr %s189, 8
        %s191 = scalar_lea.vmem [#allocation5], %s190
        // Predicated region
        $region33: #{tpu_custom_call.1} parent=27 // pred_check
          %p192 = pneg %p85
        $region34: #{tpu_custom_call.1} parent=27 // pred_check_branch
          %194 = sbr.rel (%p192) target = $region36
        $region35: #{tpu_custom_call.1} parent=27 // pred_region
          %196 = dma.done %s188, 128
        $region36: #{tpu_custom_call.1} parent=27 // pred_fallthru
          _
        %s197 = sand.u32 %s44, 1
        %s198 = scalar_lea.sflag [#allocation3], %s197
        %s199 = sand.u32 %s44, 1
        %s200 = smul.addr %s199, 8
        %s201 = scalar_lea.vmem [#allocation2], %s200
        %p202 = pneg %p57
        %p203 = pneg %p54
        %s204 = sand.u32 %s72, 1
        %s205 = scalar_lea.sflag [#allocation6], %s204
        %s206 = sand.u32 %s72, 1
        %s207 = smul.addr %s206, 8
        %s208 = scalar_lea.vmem [#allocation5], %s207
        %p209 = pneg %p85
        %p210 = pneg %p82
        %p211 = pneg %p111
        %p212 = pneg %p108
        %s213 = sand.u32 %s98, 1
        %s214 = scalar_lea.sflag [#allocation4], %s213
        %s215 = sand.u32 %s98, 1
        %s216 = smul.addr %s215, 8
        %s217 = scalar_lea.vmem [#allocation7], %s216
        %p218 = scmp.eq.s32.totalorder %s27, 0
        // Predicated region
        $region37: #{tpu_custom_call.1} parent=27 // pred_check
          %p219 = pneg %p218
        $region38: #{tpu_custom_call.1} parent=27 // pred_check_branch
          %221 = sbr.rel (%p219) target = $region40
        $region39: #{tpu_custom_call.1} parent=27 // pred_region
          %222 = vst [vmem:[%s217] sm:$0xff] 0.0
        $region40: #{tpu_custom_call.1} parent=27 // pred_fallthru
          _
        %v223 = vld [vmem:[%s181] sm:$0xff]
        %v224 = vld [vmem:[%s191] sm:$0xff]
        %v225 = vand.u32 2147483647, %v223
        %v226 = vsub.f32 0.0, %v225
        %v227 = vmul.f32 %v226, 1.442695
        %v228 = vpow.pop %v227
        %v229 = vadd.f32 %v228, 1.0
        %v230 = vrcp.pop %v229
        %v231 = vmul.f32 %v229, %v230
        %v232 = vsub.f32 2.0, %v231
        %v233 = vmul.f32 %v230, %v232
        %vm234 = vcmp.ge.f32.partialorder %v223, 0.0
        %v235 = vmul.f32 %v228, %v233
        %v236 = vsel %vm234, %v233, %v235
        %v237 = vmax.f32 %v223, 0.0
        %v238 = vmul.f32 %v223, %v224
        %v239 = vsub.f32 %v237, %v238
        %v240 = vadd.f32 %v228, 1.0
        %v241 = vlog2.pop %v240
        %v242 = vmul.f32 %v241, 0.6931472
        %v243 = vmul.f32 -0.5, %v228
        %v244 = vadd.f32 %v243, 1.0
        %v245 = vmul.f32 %v244, %v228
        %v246 = vand.u32 2147483647, %v228
        %vm247 = vcmp.lt.f32.partialorder %v246, 0.0004427343
        %v248 = vsel %vm247, %v245, %v242
        %v249 = vadd.f32 %v239, %v248
        %v250 = vmul.f32 %v236, %v224
        %v251 = vsub.f32 1.0, %v236
        %v252 = vsub.f32 1.0, %v224
        %v253 = vmul.f32 %v251, %v252
        %v254 = vadd.f32 %v250, %v253
        %v255 = vsub.f32 1.0, %v254
        %v256 = vmul.f32 %v255, %v255
        %v257 = vmul.f32 %v249, %v256
        %v258 = vmul.f32 %v224, 0.25
        %v259 = vmul.f32 %v252, 0.75
        %v260 = vadd.f32 %v258, %v259
        %v261 = vmul.f32 %v260, %v257
        %v262 = vld [vmem:[%s217] sm:$0xff]
        %v263 = vadd.f32 %v261, 0.0
        %v264 = vadd.f32 %v262, %v263
        %265 = vst [vmem:[%s217] sm:$0xff] %v264
        %s266 = sand.u32 %s98, 1
        %s267 = scalar_lea.sflag [#allocation4], %s266
        %s268 = sand.u32 %s98, 1
        %s269 = smul.addr %s268, 8
        %s270 = scalar_lea.vmem [#allocation7], %s269
        // Predicated region
        $region41: #{tpu_custom_call.1} parent=27 // pred_check
          %p271 = pneg %p108
        $region42: #{tpu_custom_call.1} parent=27 // pred_check_branch
          %273 = sbr.rel (%p271) target = $region44
        $region43: #{tpu_custom_call.1} parent=27 // pred_region
          %275 = vsyncadd %s267, 0
          %s276 = smul.addr %s26, 8
          %s277 = scalar_lea.hbm %s2, %s276
          %s279 = sshll.u32 %s270, 4
          %s280 = int_to_ptr.vmem [resolvable:$true] %s279
          %s281 = sshll.u32 %s277, 4
          %s282 = int_to_ptr.hbm [resolvable:$true] %s281
          %284 = dma.vmem_to_hbm [thread:$0]  %s280, 128, %s282, %s267
        $region44: #{tpu_custom_call.1} parent=27 // pred_fallthru
          _
      $region28: #{tpu_custom_call.1} parent=5 // pred_fallthru
        _
      %p285 = scmp.le.s32.totalorder 2, %s17
      // Predicated region
      $region45: #{tpu_custom_call.1} parent=5 // pred_check
        %p286 = pneg %p285
      $region46: #{tpu_custom_call.1} parent=5 // pred_check_branch
        %288 = sbr.rel (%p286) target = $region48
      $region47: #{tpu_custom_call.1} parent=5 // pred_region
        %s289 = ssub.s32 %s17, 2
        // Predicated region
        $region49: #{tpu_custom_call.1} parent=47 // pred_check
          %p290 = pneg %p114
        $region50: #{tpu_custom_call.1} parent=47 // pred_check_branch
          %292 = sbr.rel (%p290) target = $region52
        $region51: #{tpu_custom_call.1} parent=47 // pred_region
          %s293 = sand.u32 %s99, 1
          %s294 = scalar_lea.sflag [#allocation4], %s293
          %s295 = sand.u32 %s99, 1
          %s296 = smul.addr %s295, 8
          %s297 = scalar_lea.vmem [#allocation7], %s296
          %299 = dma.done %s294, 128
        $region52: #{tpu_custom_call.1} parent=47 // pred_fallthru
          _
      $region48: #{tpu_custom_call.1} parent=5 // pred_fallthru
        _
    $region6: #{tpu_custom_call.1} parent=1 // loop_footer
      %s21 = sadd.s32 1, %s17
    $region7: #{tpu_custom_call.1} parent=1 // loop_footer_branch
      %16 = sbr.rel target = $region3
    $region8: #{tpu_custom_call.1} parent=1 // loop_exit
      _
    %300 = vsyncpa [#allocation3], 1
    %s301 = scalar_lea.sflag [#allocation3], 1
    %302 = vsyncpa %s301, 1
    %303 = vsyncpa [#allocation6], 1
    %s304 = scalar_lea.sflag [#allocation6], 1
    %305 = vsyncpa %s304, 1
    %306 = vsyncpa [#allocation4], 1
    %s307 = scalar_lea.sflag [#allocation4], 1
    %308 = vsyncpa %s307, 1

</llo_original>
